<compile_context>
chip_gen: v6e
topology: v6e:2x2x1
jax: 0.10.0
libtpu: 0.0.40
codegen_flags: <defaults>
</compile_context>

<pallas_src>
import functools
import math

import numpy as np
import jax
import jax.numpy as jnp
from jax import lax
from jax.experimental import pallas as pl
from jax.experimental.pallas import tpu as pltpu

# ---- CLIP / SD v1.4 tokenizer constants -------------------------------------------
MAX_LEN = 77           # CLIPTokenizer.model_max_length
BOS_ID = 49406         # "<|startoftext|>"
EOS_ID = 49407         # "<|endoftext|>"
PAD_ID = 49407         # pad == eos for the SD v1.4 CLIP tokenizer
LANE_PAD = 128         # lane-aligned working width (>= MAX_LEN)

# ---- demo-scale CLIP text-encoder config (real SD v1.4: D=768, H=12, L=12, FF=3072)
VOCAB = 49408
D_MODEL = 128
N_HEADS = 2
HEAD_DIM = D_MODEL // N_HEADS
N_LAYERS = 2
D_FF = 4 * D_MODEL
S_PAD = LANE_PAD       # padded sequence length used on-device
LN_EPS = 1e-5


# ====================================================================================
# Kernel 1: tokenizer (pad / truncate / BOS / EOS / attention_mask / EOS position)
# ====================================================================================
def clip_tokenize_kernel(tok_ref, len_ref, ids_ref, mask_ref, eos_ref):
    """tok_ref : [TB, 128] int32 raw ids (token t at lane t)
       len_ref : [TB, 1]   int32 number of valid raw tokens
       ids_ref : [TB, 128] int32 input_ids (valid in [:, :77])
       mask_ref: [TB, 128] int8  attention_mask (valid in [:, :77])
       eos_ref : [TB, 1]   int32 EOS position
    """
    toks = tok_ref[...]
    lens = len_ref[...]
    tb, w = toks.shape

    # truncation=True, max_length=77 -> keep at most 75 content tokens
    content_len = jnp.clip(lens, 0, MAX_LEN - 2)      # [TB, 1]
    eos_pos = content_len + 1                         # [TB, 1]

    # 1-lane shift: token t moves to lane t+1, lane 0 becomes the BOS slot
    # (the wrapped lane is overwritten by BOS below).  XLU op -> effectively free.
    shifted = pltpu.roll(toks, shift=1, axis=1)

    pos = lax.broadcasted_iota(jnp.int32, (tb, w), 1)

    ids = jnp.where(
        pos == 0,
        jnp.int32(BOS_ID),
        jnp.where(
            pos <= content_len,
            shifted,
            jnp.where(pos == eos_pos, jnp.int32(EOS_ID), jnp.int32(PAD_ID)),
        ),
    )

    ids_ref[...] = ids
    mask_ref[...] = (pos <= eos_pos).astype(jnp.int8)   # BOS + content + EOS -> 1
    eos_ref[...] = eos_pos


def _batch_tile(batch):
    # lane-dense (TB, 128) tiles; keep several grid steps for large batches so the
    # tokenizer grid can still shard across cores (v7x), full batch when small/odd.
    if batch % 8 == 0:
        return min(batch, 256)
    return batch


def tokenize_full(raw_token_ids, lengths):
    """Numeric CLIPTokenizer on TPU.

    raw_token_ids : [B, W] int32 pre-tokenized BPE ids, token j at column j.  Only the
                    first min(lengths[b], 75) columns of row b are read.
    lengths       : [B] int32 valid raw-token count per row.

    Returns (input_ids [B,128] i32, attention_mask [B,128] i8, eos_pos [B,1] i32);
    only columns [:77] of ids/mask are meaningful (kept 128-wide for lane-dense stores).
    """
    raw = jnp.asarray(raw_token_ids, jnp.int32)
    lengths = jnp.asarray(lengths, jnp.int32)
    B, W = raw.shape
    if W < LANE_PAD:
        raw = jnp.pad(raw, ((0, 0), (0, LANE_PAD - W)))
    elif W > LANE_PAD:
        raw = raw[:, :LANE_PAD]

    TB = _batch_tile(B)
    ids_full, mask_full, eos_pos = pl.pallas_call(
        clip_tokenize_kernel,
        out_shape=(
            jax.ShapeDtypeStruct((B, LANE_PAD), jnp.int32),
            jax.ShapeDtypeStruct((B, LANE_PAD), jnp.int8),
            jax.ShapeDtypeStruct((B, 1), jnp.int32),
        ),
        grid=(pl.cdiv(B, TB),),
        in_specs=[
            pl.BlockSpec((TB, LANE_PAD), lambda i: (i, 0)),
            pl.BlockSpec((TB, 1), lambda i: (i, 0)),
        ],
        out_specs=(
            pl.BlockSpec((TB, LANE_PAD), lambda i: (i, 0)),
            pl.BlockSpec((TB, LANE_PAD), lambda i: (i, 0)),
            pl.BlockSpec((TB, 1), lambda i: (i, 0)),
        ),
        compiler_params=pltpu.CompilerParams(dimension_semantics=("parallel",)),
    )(raw, lengths.reshape(B, 1))
    return ids_full, mask_full, eos_pos


def clip_text_tokenizer(raw_token_ids, lengths):
    """Pallas equivalent of CLIPTextTokenizer.forward (on pre-tokenized ids)."""
    ids_full, mask_full, _ = tokenize_full(raw_token_ids, lengths)
    return {
        "input_ids": ids_full[:, :MAX_LEN],        # HF returns int64; int32 on TPU
        "attention_mask": mask_full[:, :MAX_LEN],  # int8 0/1
    }


# ====================================================================================
# Kernel 2: CLIP text encoder + EOS pooling (RB batch rows per grid step)
# ====================================================================================
def clip_encoder_kernel(
    rb,                               # Python constant: batch rows per grid step
    eos_ref,                          # scalar prefetch (SMEM): [B] int32 EOS positions
    x_ref,                            # [RB, S, D] f32  (tok_emb[ids] + pos_emb)
    ln1_g_ref, ln1_b_ref,             # [L, 1, D] f32
    attn_w_ref,                       # [L, 4, D, D] bf16  (q, k, v, o)
    attn_b_ref,                       # [L, 4, 1, D] f32
    ln2_g_ref, ln2_b_ref,             # [L, 1, D] f32
    w1_ref, b1_ref,                   # [L, D, FF] bf16, [L, 1, FF] f32
    w2_ref, b2_ref,                   # [L, FF, D] bf16, [L, 1, D] f32
    lnf_g_ref, lnf_b_ref,             # [1, D] f32
    out_ref,                          # [RB, 1, D] f32  pooled outputs
):
    base = pl.program_id(0) * rb
    eos = [eos_ref[base + r] for r in range(rb)]

    # stack RB rows along M so projections / MLP are [RB*S, D] matmuls
    x = x_ref[...].reshape(rb * S_PAD, D_MODEL)             # [RB*S, D] f32

    # per-row attention mask (causal AND key <= eos), built once per grid step
    qpos = lax.broadcasted_iota(jnp.int32, (S_PAD, S_PAD), 0)
    kpos = lax.broadcasted_iota(jnp.int32, (S_PAD, S_PAD), 1)
    amask = [(kpos <= qpos) & (kpos <= eos[r]) for r in range(rb)]

    neg = jnp.float32(-1e30)
    scale = jnp.float32(1.0 / math.sqrt(HEAD_DIM))

    def layer_norm(t, g, beta):
        mu = jnp.mean(t, axis=-1, keepdims=True)
        c = t - mu
        var = jnp.mean(c * c, axis=-1, keepdims=True)
        return c * lax.rsqrt(var + LN_EPS) * g + beta

    def bf16(t):
        return t.astype(jnp.bfloat16)

    for l in range(N_LAYERS):
        # ---- pre-LN multi-head causal self-attention (bf16 operands, f32 accum)
        xn = bf16(layer_norm(x, ln1_g_ref[l], ln1_b_ref[l]))
        q = jnp.dot(xn, attn_w_ref[l, 0], preferred_element_type=jnp.float32) + attn_b_ref[l, 0]
        k = jnp.dot(xn, attn_w_ref[l, 1], preferred_element_type=jnp.float32) + attn_b_ref[l, 1]
        v = jnp.dot(xn, attn_w_ref[l, 2], preferred_element_type=jnp.float32) + attn_b_ref[l, 2]

        attn_rows = []
        for r in range(rb):
            rs = slice(r * S_PAD, (r + 1) * S_PAD)
            heads = []
            for h in range(N_HEADS):
                # TODO(synk): head-batched attention (no 64-lane head slices) is needed
                #             at real D=768/H=12; modest cost at demo scale.
                hs = slice(h * HEAD_DIM, (h + 1) * HEAD_DIM)
                qh = bf16(q[rs, hs] * scale)
                kh = bf16(k[rs, hs])
                vh = bf16(v[rs, hs])
                s_qk = lax.dot_general(
                    qh, kh, (((1,), (1,)), ((), ())), preferred_element_type=jnp.float32
                )                                              # [S, S] f32
                s_qk = jnp.where(amask[r], s_qk, neg)
                s_qk = s_qk - jnp.max(s_qk, axis=-1, keepdims=True)
                p = jnp.exp(s_qk)
                p = p * pl.reciprocal(jnp.sum(p, axis=-1, keepdims=True), approx=True)
                heads.append(jnp.dot(bf16(p), vh, preferred_element_type=jnp.float32))
            attn_rows.append(jnp.concatenate(heads, axis=-1))  # [S, D]
        attn = jnp.concatenate(attn_rows, axis=0)              # [RB*S, D]
        attn = jnp.dot(bf16(attn), attn_w_ref[l, 3],
                       preferred_element_type=jnp.float32) + attn_b_ref[l, 3]
        x = x + attn

        # ---- pre-LN MLP with quick_gelu (elementwise math stays f32)
        xn = bf16(layer_norm(x, ln2_g_ref[l], ln2_b_ref[l]))
        h1 = jnp.dot(xn, w1_ref[l], preferred_element_type=jnp.float32) + b1_ref[l]
        h1 = h1 * jax.nn.sigmoid(jnp.float32(1.702) * h1)
        x = x + jnp.dot(bf16(h1), w2_ref[l], preferred_element_type=jnp.float32) + b2_ref[l]

    # ---- EOS pooling first, then final LayerNorm on the pooled [1, D] row only
    rows = lax.broadcasted_iota(jnp.int32, (S_PAD, 1), 0)
    pooled = []
    for r in range(rb):
        sel = (rows == eos[r]).astype(jnp.float32)              # [S, 1]
        xr = x[r * S_PAD:(r + 1) * S_PAD, :]                    # [S, D]
        p_r = jnp.sum(xr * sel, axis=0, keepdims=True)          # [1, D]
        pooled.append(layer_norm(p_r, lnf_g_ref[...], lnf_b_ref[...]))
    out_ref[...] = jnp.concatenate(pooled, axis=0).reshape(rb, 1, D_MODEL)


def clip_pooled_embedder(raw_token_ids, lengths, params):
    """Pallas equivalent of CLIPPooledEmbedder.forward (on pre-tokenized ids).

    Returns z of shape [B, 1, D_MODEL]  (pooler_output.unsqueeze(1)).
    """
    ids_full, _mask_full, eos_pos = tokenize_full(raw_token_ids, lengths)
    B = ids_full.shape[0]
    p = params

    # Embedding gather + positional add in XLA: one contiguous blocked input for the
    # kernel instead of 128 tiny per-token DMAs per row.
    x = jnp.take(p["tok_emb"], ids_full, axis=0) + p["pos_emb"][None]   # [B, S, D] f32

    # bf16 weight copies for the MXU (activations cast in-kernel, f32 accumulation).
    attn_w = p["attn_w"].astype(jnp.bfloat16)
    w1 = p["w1"].astype(jnp.bfloat16)
    w2 = p["w2"].astype(jnp.bfloat16)

    rb = 2 if B % 2 == 0 else 1          # 2 rows per grid step -> [256, 128] matmuls
    eos_flat = eos_pos.reshape(B)        # 1-D int32, tiny SMEM footprint

    const2 = lambda i, *_: (0, 0)
    const3 = lambda i, *_: (0, 0, 0)
    const4 = lambda i, *_: (0, 0, 0, 0)

    encoder = pl.pallas_call(
        functools.partial(clip_encoder_kernel, rb),
        out_shape=jax.ShapeDtypeStruct((B, 1, D_MODEL), jnp.float32),
        grid_spec=pltpu.PrefetchScalarGridSpec(
            num_scalar_prefetch=1,
            grid=(B // rb,),
            in_specs=[
                pl.BlockSpec((rb, S_PAD, D_MODEL), lambda i, *_: (i, 0, 0)),   # x
                pl.BlockSpec((N_LAYERS, 1, D_MODEL), const3),                  # ln1_g
                pl.BlockSpec((N_LAYERS, 1, D_MODEL), const3),                  # ln1_b
                pl.BlockSpec((N_LAYERS, 4, D_MODEL, D_MODEL), const4),         # attn_w bf16
                pl.BlockSpec((N_LAYERS, 4, 1, D_MODEL), const4),               # attn_b
                pl.BlockSpec((N_LAYERS, 1, D_MODEL), const3),                  # ln2_g
                pl.BlockSpec((N_LAYERS, 1, D_MODEL), const3),                  # ln2_b
                pl.BlockSpec((N_LAYERS, D_MODEL, D_FF), const3),               # w1 bf16
                pl.BlockSpec((N_LAYERS, 1, D_FF), const3),                     # b1
                pl.BlockSpec((N_LAYERS, D_FF, D_MODEL), const3),               # w2 bf16
                pl.BlockSpec((N_LAYERS, 1, D_MODEL), const3),                  # b2
                pl.BlockSpec((1, D_MODEL), const2),                            # lnf_g
                pl.BlockSpec((1, D_MODEL), const2),                            # lnf_b
            ],
            out_specs=pl.BlockSpec((rb, 1, D_MODEL), lambda i, *_: (i, 0, 0)),
        ),
        compiler_params=pltpu.CompilerParams(dimension_semantics=("parallel",)),
    )
    z = encoder(
        eos_flat,                                   # scalar prefetch (SMEM)
        x,
        p["ln1_g"], p["ln1_b"], attn_w, p["attn_b"],
        p["ln2_g"], p["ln2_b"], w1, p["b1"], w2, p["b2"],
        p["lnf_g"], p["lnf_b"],
    )
    return z


# ====================================================================================
# Demo weights + pure-JAX / numpy references
# ====================================================================================
def init_clip_text_params(key):
    ks = jax.random.split(key, 8)
    s = 0.02
    nrm = lambda k, shape: jax.random.normal(k, shape, jnp.float32) * s
    pos = jnp.zeros((S_PAD, D_MODEL), jnp.float32).at[:MAX_LEN].set(
        nrm(ks[1], (MAX_LEN, D_MODEL))
    )
    return dict(
        tok_emb=nrm(ks[0], (VOCAB, D_MODEL)),
        pos_emb=pos,
        ln1_g=jnp.ones((N_LAYERS, 1, D_MODEL), jnp.float32),
        ln1_b=jnp.zeros((N_LAYERS, 1, D_MODEL), jnp.float32),
        attn_w=nrm(ks[2], (N_LAYERS, 4, D_MODEL, D_MODEL)),
        attn_b=nrm(ks[3], (N_LAYERS, 4, 1, D_MODEL)),
        ln2_g=jnp.ones((N_LAYERS, 1, D_MODEL), jnp.float32),
        ln2_b=jnp.zeros((N_LAYERS, 1, D_MODEL), jnp.float32),
        w1=nrm(ks[4], (N_LAYERS, D_MODEL, D_FF)),
        b1=nrm(ks[5], (N_LAYERS, 1, D_FF)),
        w2=nrm(ks[6], (N_LAYERS, D_FF, D_MODEL)),
        b2=nrm(ks[7], (N_LAYERS, 1, D_MODEL)),
        lnf_g=jnp.ones((1, D_MODEL), jnp.float32),
        lnf_b=jnp.zeros((1, D_MODEL), jnp.float32),
    )


def _reference_tokenize(raw, lens):
    raw = np.asarray(raw)
    lens = np.asarray(lens)
    B = raw.shape[0]
    ids = np.full((B, MAX_LEN), PAD_ID, np.int32)
    mask = np.zeros((B, MAX_LEN), np.int32)
    for b in range(B):
        n = int(min(int(lens[b]), MAX_LEN - 2))
        ids[b, 0] = BOS_ID
        ids[b, 1:1 + n] = raw[b, :n]
        ids[b, 1 + n] = EOS_ID
        mask[b, :n + 2] = 1
    return ids, mask


def _reference_pooled(ids_full, eos_pos, p):
    HI = jax.lax.Precision.HIGHEST

    def ln(t, g, beta):
        mu = jnp.mean(t, axis=-1, keepdims=True)
        c = t - mu
        var = jnp.mean(c * c, axis=-1, keepdims=True)
        return c * lax.rsqrt(var + LN_EPS) * g + beta

    S = ids_full.shape[1]
    qpos = jnp.arange(S)[:, None]
    kpos = jnp.arange(S)[None, :]
    outs = []
    for bi in range(ids_full.shape[0]):
        eos = eos_pos[bi, 0]
        xb = jnp.take(p["tok_emb"], ids_full[bi], axis=0) + p["pos_emb"]
        amask = (kpos <= qpos) & (kpos <= eos)
        for l in range(N_LAYERS):
            xn = ln(xb, p["ln1_g"][l, 0], p["ln1_b"][l, 0])
            q = jnp.dot(xn, p["attn_w"][l, 0], precision=HI) + p["attn_b"][l, 0, 0]
            k = jnp.dot(xn, p["attn_w"][l, 1], precision=HI) + p["attn_b"][l, 1, 0]
            v = jnp.dot(xn, p["attn_w"][l, 2], precision=HI) + p["attn_b"][l, 2, 0]
            heads = []
            for h in range(N_HEADS):
                sl = slice(h * HEAD_DIM, (h + 1) * HEAD_DIM)
                qh = q[:, sl] * (1.0 / math.sqrt(HEAD_DIM))
                s = jnp.dot(qh, k[:, sl].T, precision=HI)
                s = jnp.where(amask, s, -1e30)
                s = s - jnp.max(s, axis=-1, keepdims=True)
                pr = jnp.exp(s)
                pr = pr / jnp.sum(pr, axis=-1, keepdims=True)
                heads.append(jnp.dot(pr, v[:, sl], precision=HI))
            attn = jnp.concatenate(heads, axis=-1)
            attn = jnp.dot(attn, p["attn_w"][l, 3], precision=HI) + p["attn_b"][l, 3, 0]
            xb = xb + attn
            xn = ln(xb, p["ln2_g"][l, 0], p["ln2_b"][l, 0])
            hmid = jnp.dot(xn, p["w1"][l], precision=HI) + p["b1"][l, 0]
            hmid = hmid * jax.nn.sigmoid(1.702 * hmid)
            xb = xb + jnp.dot(hmid, p["w2"][l], precision=HI) + p["b2"][l, 0]
        xb = ln(xb, p["lnf_g"][0], p["lnf_b"][0])
        outs.append(xb[eos])
    return jnp.stack(outs)[:, None, :]


# ====================================================================================
if __name__ == "__main__":
    key = jax.random.PRNGKey(0)
    k_tok, k_par = jax.random.split(key)

    B = 4
    # pre-tokenized raw ids, lane-aligned buffer (token j at column j); no BOS/EOS ids
    raw_token_ids = jax.random.randint(k_tok, (B, LANE_PAD), 0, BOS_ID, dtype=jnp.int32)
    lengths = jnp.array([9, 5, 80, 0], dtype=jnp.int32)   # includes truncation + empty
    params = init_clip_text_params(k_par)

    # --- tokenizer sub-module (CLIPTextTokenizer.forward on pre-tokenized ids)
    tokens = clip_text_tokenizer(raw_token_ids, lengths)
    jax.block_until_ready(tokens)
    ref_ids, ref_mask = _reference_tokenize(np.asarray(raw_token_ids), np.asarray(lengths))
    np.testing.assert_array_equal(np.asarray(tokens["input_ids"]), ref_ids)
    np.testing.assert_array_equal(
        np.asarray(tokens["attention_mask"]).astype(np.int32), ref_mask
    )

    # --- full CLIPPooledEmbedder.forward
    z = clip_pooled_embedder(raw_token_ids, lengths, params)
    jax.block_until_ready(z)
    assert z.shape == (B, 1, D_MODEL)

    ids_full, _, eos_pos = tokenize_full(raw_token_ids, lengths)
    z_ref = _reference_pooled(ids_full, eos_pos, params)
    # bf16 matmul operands in the kernel vs f32 HIGHEST reference -> loose tolerance
    np.testing.assert_allclose(np.asarray(z), np.asarray(z_ref), rtol=5e-2, atol=5e-2)

    print("KERNEL_OK")
</pallas_src>

<mosaic_0001>
module attributes {stable_mosaic.version = 11 : i64} {
  func.func @clip_tokenize_kernel(%arg0: i32, %arg1: memref<4x128xi32, #tpu.memory_space<vmem>>, %arg2: memref<4x1xi32, #tpu.memory_space<vmem>>, %arg3: memref<4x128xi32, #tpu.memory_space<vmem>>, %arg4: memref<4x128xi8, #tpu.memory_space<vmem>>, %arg5: memref<4x1xi32, #tpu.memory_space<vmem>>) attributes {dimension_semantics = [#tpu.dimension_semantics<parallel>], iteration_bounds = array<i64: 1>, scalar_prefetch = 0 : i64, scratch_operands = 0 : i64, tpu.core_type = #tpu.core_type<tc>, window_params = [{transform_indices = @transform_0, window_bounds = array<i64: 4, 128>}, {transform_indices = @transform_1, window_bounds = array<i64: 4, 1>}, {transform_indices = @transform_2, window_bounds = array<i64: 4, 128>}, {transform_indices = @transform_3, window_bounds = array<i64: 4, 128>}, {transform_indices = @transform_4, window_bounds = array<i64: 4, 1>}]} {
    %c0 = arith.constant 0 : index
    %c0_0 = arith.constant 0 : index
    %0 = vector.load %arg1[%c0, %c0_0] : memref<4x128xi32, #tpu.memory_space<vmem>>, vector<4x128xi32>
    %c0_1 = arith.constant 0 : index
    %c0_2 = arith.constant 0 : index
    %1 = vector.load %arg2[%c0_1, %c0_2] : memref<4x1xi32, #tpu.memory_space<vmem>>, vector<4x1xi32>
    %c0_i32 = arith.constant 0 : i32
    %c75_i32 = arith.constant 75 : i32
    %2 = vector.broadcast %c0_i32 : i32 to vector<4x1xi32>
    %3 = arith.maxsi %2, %1 : vector<4x1xi32>
    %4 = vector.broadcast %c75_i32 : i32 to vector<4x1xi32>
    %5 = arith.minsi %4, %3 : vector<4x1xi32>
    %c1_i32 = arith.constant 1 : i32
    %6 = vector.broadcast %c1_i32 : i32 to vector<4x1xi32>
    %7 = arith.addi %5, %6 : vector<4x1xi32>
    %c1_i32_3 = arith.constant 1 : i32
    %8 = tpu.dynamic_rotate %0 by %c1_i32_3 dim 1 : vector<4x128xi32>, i32 -> vector<4x128xi32>
    %9 = tpu.iota {dimensions = array<i32: 1>} : vector<4x128xi32>
    %c0_i32_4 = arith.constant 0 : i32
    %10 = vector.broadcast %c0_i32_4 : i32 to vector<4x128xi32>
    %11 = arith.cmpi eq, %9, %10 : vector<4x128xi32>
    %12 = vector.broadcast %5 : vector<4x1xi32> to vector<4x128xi32>
    %13 = arith.cmpi sle, %9, %12 : vector<4x128xi32>
    %14 = vector.broadcast %7 : vector<4x1xi32> to vector<4x128xi32>
    %15 = arith.cmpi eq, %9, %14 : vector<4x128xi32>
    %c49407_i32 = arith.constant 49407 : i32
    %c49407_i32_5 = arith.constant 49407 : i32
    %16 = vector.broadcast %c49407_i32 : i32 to vector<4x128xi32>
    %17 = vector.broadcast %c49407_i32_5 : i32 to vector<4x128xi32>
    %18 = arith.select %15, %16, %17 : vector<4x128xi1>, vector<4x128xi32>
    %19 = arith.select %13, %8, %18 : vector<4x128xi1>, vector<4x128xi32>
    %c49406_i32 = arith.constant 49406 : i32
    %20 = vector.broadcast %c49406_i32 : i32 to vector<4x128xi32>
    %21 = arith.select %11, %20, %19 : vector<4x128xi1>, vector<4x128xi32>
    %c0_6 = arith.constant 0 : index
    %c0_7 = arith.constant 0 : index
    %22 = vector.load %arg3[%c0_6, %c0_7] : memref<4x128xi32, #tpu.memory_space<vmem>>, vector<4x128xi32>
    tpu.vector_store %arg3[%c0_6, %c0_7], %21 {strides = array<i32>} : memref<4x128xi32, #tpu.memory_space<vmem>>, vector<4x128xi32>,
    %23 = vector.broadcast %7 : vector<4x1xi32> to vector<4x128xi32>
    %24 = arith.cmpi sle, %9, %23 : vector<4x128xi32>
    %25 = arith.extui %24 : vector<4x128xi1> to vector<4x128xi8>
    %c0_8 = arith.constant 0 : index
    %c0_9 = arith.constant 0 : index
    %26 = vector.load %arg4[%c0_8, %c0_9] : memref<4x128xi8, #tpu.memory_space<vmem>>, vector<4x128xi8>
    tpu.vector_store %arg4[%c0_8, %c0_9], %25 {strides = array<i32>} : memref<4x128xi8, #tpu.memory_space<vmem>>, vector<4x128xi8>,
    %c0_10 = arith.constant 0 : index
    %c0_11 = arith.constant 0 : index
    %27 = vector.load %arg5[%c0_10, %c0_11] : memref<4x1xi32, #tpu.memory_space<vmem>>, vector<4x1xi32>
    tpu.vector_store %arg5[%c0_10, %c0_11], %7 {strides = array<i32>} : memref<4x1xi32, #tpu.memory_space<vmem>>, vector<4x1xi32>,
    return
  }
  func.func @transform_0(%arg0: i32) -> (i32, i32) {
    %c0_i32 = arith.constant 0 : i32
    %c0_i32_0 = arith.constant 0 : i32
    return %arg0, %c0_i32 : i32, i32
  }
  func.func @transform_1(%arg0: i32) -> (i32, i32) {
    %c0_i32 = arith.constant 0 : i32
    %c0_i32_0 = arith.constant 0 : i32
    return %arg0, %c0_i32 : i32, i32
  }
  func.func @transform_2(%arg0: i32) -> (i32, i32) {
    %c0_i32 = arith.constant 0 : i32
    %c0_i32_0 = arith.constant 0 : i32
    return %arg0, %c0_i32 : i32, i32
  }
  func.func @transform_3(%arg0: i32) -> (i32, i32) {
    %c0_i32 = arith.constant 0 : i32
    %c0_i32_0 = arith.constant 0 : i32
    return %arg0, %c0_i32 : i32, i32
  }
  func.func @transform_4(%arg0: i32) -> (i32, i32) {
    %c0_i32 = arith.constant 0 : i32
    %c0_i32_0 = arith.constant 0 : i32
    return %arg0, %c0_i32 : i32, i32
  }
}

</mosaic_0001>

<llo_original>
// kernel: tpu_custom_call.1
$region0: #{tpu_custom_call.1}
  #allocation0 [shape = 'u32[]', space=smem, size = 0x4, offset = 0x4, fixed_abs, tag = 'smem constant byte address 0x4 - core index']
  #allocation1 [shape = 'u32[144,128]{1,0:T(1,128)}', space=vmem, size = 0x12000, scoped, tag = 'internal scratch']
  %s0 = inlined_call_operand.vmem [shape: s32[4,128], index: 0, kind: input, shape index: {}]
  %s1 = inlined_call_operand.vmem [shape: s32[4,1], index: 1, kind: input, shape index: {}]
  %s2 = inlined_call_operand.hbm [shape: s32[4,128], index: 2, kind: output, shape index: {0}]
  %s3 = inlined_call_operand.hbm [shape: s8[4,128], index: 3, kind: output, shape index: {1}]
  %s4 = inlined_call_operand.vmem [shape: s32[4,1], index: 4, kind: output, shape index: {2}]
  %5 = xla_tuple %s2, %s3, %s4
  %s6 = sld [smem:[#allocation0]]
  $region34: #{tpu_custom_call.1} parent=0
    _
  %s8 = ssub.s32 1, %s6
  %s9 = scalar_select 0, %s8, %s6
  $region1: #{tpu_custom_call.1} parent=0
    #allocation2 [shape = 'u8[2048]{0}', space=vmem, size = 0x800, scoped, tag = 'output window, operand 0, single buffered']
    #allocation3 [shape = 's32[1]{0}', space=sflag, size = 0x4, scoped, tag = 'scoped memory for tpu_custom_call.1']
    #allocation4 [shape = 'u8[512]{0}', space=vmem, size = 0x400, scoped, tag = 'output window, operand 1, single buffered']
    #allocation5 [shape = 's32[1]{0}', space=sflag, size = 0x4, scoped, tag = 'scoped memory for tpu_custom_call.1']
    %10 = vsyncpa [#allocation3], 0
    %11 = vsyncpa [#allocation5], 0
    // Predicated region
    $region2: #{tpu_custom_call.1} parent=1 // pred_check
      _
    $region3: #{tpu_custom_call.1} parent=1 // pred_check_branch
      %13 = sbr.rel (0) target = $region5
    $region4: #{tpu_custom_call.1} parent=1 // pred_region
      _
    $region5: #{tpu_custom_call.1} parent=1 // pred_fallthru
      _
    // Predicated region
    $region6: #{tpu_custom_call.1} parent=1 // pred_check
      _
    $region7: #{tpu_custom_call.1} parent=1 // pred_check_branch
      %15 = sbr.rel (0) target = $region9
    $region8: #{tpu_custom_call.1} parent=1 // pred_region
      _
    $region9: #{tpu_custom_call.1} parent=1 // pred_fallthru
      _
    %v18 = vld [vmem:[%s0] sm:$0xf]
    %v19 = vld [vmem:[%s1] sm:$0xf]
    %vm20 = vcmp.gt.s32.totalorder %v19, 0
    %v21 = vsel %vm20, %v19, 0
    %vm22 = vcmp.lt.s32.totalorder %v21, 75
    %v23 = vsel %vm22, %v21, 75
    %v24 = vadd.s32 %v23, 1
    %25 = vrot.lane.b32.xlu0 %v18, 1
    %v26 = vpop.permute.xlu0 %25
    %v27 = vlaneseq
    %v28 = vand.u32 %v27, 127
    %vm29 = vcmp.eq.s32.totalorder %v28, 0
    %30 = vset.pattern.permute.xlu0 0
    %31 = vperm.xlu0 %30, %v23
    %v32 = vpop.permute.xlu0 %31
    %vm33 = vcmp.le.s32.totalorder %v28, %v32
    %v34 = vsel %vm33, %v26, 49407
    %v35 = vsel %vm29, 49406, %v34
    %36 = vst [vmem:[#allocation2] sm:$0xf] %v35
    %37 = vset.pattern.permute.xlu0 0
    %38 = vperm.xlu0 %37, %v24
    %v39 = vpop.permute.xlu0 %38
    %vm40 = vcmp.le.s32.totalorder %v28, %v39
    %vm41 = vmpackc.low %vm40, %vm40
    %vm42 = vmpackc.even %vm41, %vm41
    %v43 = vsel %vm42, 16843009, 0
    %44 = vst [vmem:[#allocation4] sm:$0x1] %v43
    %vm45 = vcmask 3072
    %46 = vst.msk [vmem:[%s4] sm:$0xf] %vm45, %v24
    // Predicated region
    $region10: #{tpu_custom_call.1} parent=1 // pred_check
      _
    $region11: #{tpu_custom_call.1} parent=1 // pred_check_branch
      %48 = sbr.rel (0) target = $region13
    $region12: #{tpu_custom_call.1} parent=1 // pred_region
      %s50 = ssub.s32 64, 64
      %51 = vsyncadd [#allocation3], %s50
      %s53 = sshll.u32 [#allocation2], 4
      %s54 = int_to_ptr.vmem [resolvable:$true] %s53
      %56 = dma.vmem_to_hbm [thread:$0]  %s54, 64, %s2, [#allocation3]
    $region13: #{tpu_custom_call.1} parent=1 // pred_fallthru
      _
    // Predicated region
    $region14: #{tpu_custom_call.1} parent=1 // pred_check
      _
    $region15: #{tpu_custom_call.1} parent=1 // pred_check_branch
      %58 = sbr.rel (0) target = $region17
    $region16: #{tpu_custom_call.1} parent=1 // pred_region
      %s60 = ssub.s32 16, 16
      %61 = vsyncadd [#allocation5], %s60
      %s63 = sshll.u32 [#allocation4], 4
      %s64 = int_to_ptr.vmem [resolvable:$true] %s63
      %66 = dma.vmem_to_hbm [thread:$0]  %s64, 16, %s3, [#allocation5]
    $region17: #{tpu_custom_call.1} parent=1 // pred_fallthru
      _
    // Predicated region
    $region18: #{tpu_custom_call.1} parent=1 // pred_check
      _
    $region19: #{tpu_custom_call.1} parent=1 // pred_check_branch
      %68 = sbr.rel (0) target = $region21
    $region20: #{tpu_custom_call.1} parent=1 // pred_region
      _
    $region21: #{tpu_custom_call.1} parent=1 // pred_fallthru
      _
    // Predicated region
    $region22: #{tpu_custom_call.1} parent=1 // pred_check
      _
    $region23: #{tpu_custom_call.1} parent=1 // pred_check_branch
      %70 = sbr.rel (0) target = $region25
    $region24: #{tpu_custom_call.1} parent=1 // pred_region
      %71 = dma.done [#allocation3], 64
    $region25: #{tpu_custom_call.1} parent=1 // pred_fallthru
      _
    // Predicated region
    $region26: #{tpu_custom_call.1} parent=1 // pred_check
      _
    $region27: #{tpu_custom_call.1} parent=1 // pred_check_branch
      %73 = sbr.rel (0) target = $region29
    $region28: #{tpu_custom_call.1} parent=1 // pred_region
      %74 = dma.done [#allocation5], 16
    $region29: #{tpu_custom_call.1} parent=1 // pred_fallthru
      _
    // Predicated region
    $region30: #{tpu_custom_call.1} parent=1 // pred_check
      _
    $region31: #{tpu_custom_call.1} parent=1 // pred_check_branch
      %76 = sbr.rel (0) target = $region33
    $region32: #{tpu_custom_call.1} parent=1 // pred_region
      _
    $region33: #{tpu_custom_call.1} parent=1 // pred_fallthru
      _
    %77 = vsyncpa [#allocation3], 1
    %78 = vsyncpa [#allocation5], 1

</llo_original>
